<compile_context>
chip_gen: v5e
topology: v5e:2x2
jax: 0.10.0
libtpu: 0.0.40
codegen_flags: <defaults>
</compile_context>

<pallas_src>
import jax
import jax.numpy as jnp
from jax.experimental import pallas as pl
from jax.experimental.pallas import tpu as pltpu


def _round_up(a, m):
    return ((a + m - 1) // m) * m


def _csl_kernel(x_ref, w_ref, gb_ref, o_ref):
    # x_ref:  (TILE_N, dim_in)          w_ref: (dim_in, dim_out)
    # gb_ref: (2, dim_out)  [row 0 = gate, row 1 = eff_bias]
    # o_ref:  (TILE_N, dim_out)
    h = jnp.dot(x_ref[...], w_ref[...], preferred_element_type=jnp.float32)
    gate = gb_ref[0:1, :].astype(jnp.float32)
    eff_bias = gb_ref[1:2, :].astype(jnp.float32)
    o_ref[...] = (h * gate + eff_bias).astype(o_ref.dtype)


def concat_squash_linear(context, x, params, *, tile_n=512,
                         compute_dtype=None, out_dtype=None):
    """context: (B, 1+dim_c), x: (B, N, dim_in) -> (B, N, dim_out)."""
    w, b, wg, bg, wb = params
    B, N, dim_in = x.shape
    dim_out = w.shape[1]
    if out_dtype is None:
        out_dtype = x.dtype

    # ---- hoist the tiny context-dependent matmuls out of the kernel ----------
    gate = jax.nn.sigmoid(context @ wg + bg)                 # (B, dim_out)
    hbias = context @ wb                                     # (B, dim_out)
    # Fold the layer bias:  (x@W + b)*gate + hbias == (x@W)*gate + (b*gate + hbias)
    eff_bias = b * gate + hbias                              # (B, dim_out)
    gb = jnp.stack([gate, eff_bias], axis=1).astype(jnp.float32)   # (B, 2, dim_out)

    # ---- optional reduced-precision input path (f32 accumulation in-kernel) --
    if compute_dtype is not None:
        x = x.astype(compute_dtype)
        w = w.astype(compute_dtype)

    # ---- row tiling: no padding, Pallas masks the partial tail tile ----------
    tile_n = min(tile_n, _round_up(N, 8))                    # small N: single tile
    n_tiles = pl.cdiv(N, tile_n)
    grid = (n_tiles, B)                                      # N-axis first: better
                                                             # 2-TC sharding when B is tiny

    out = pl.pallas_call(
        _csl_kernel,
        out_shape=jax.ShapeDtypeStruct((B, N, dim_out), out_dtype),
        grid_spec=pltpu.PrefetchScalarGridSpec(
            num_scalar_prefetch=0,
            grid=grid,
            in_specs=[
                # x: one (TILE_N, dim_in) row tile per step, batch dim squeezed.
                pl.BlockSpec((None, tile_n, dim_in), lambda ni, bi: (bi, ni, 0)),
                # W: grid-invariant (constant block index -> stays VMEM-resident).
                # TODO(synk): on v7x with very large dim_in*dim_out, reclaim the
                # redundant second buffer (pipeline_mode=pl.Buffered(1)) or add a
                # K grid axis + f32 accumulator to fit the 64 MiB VMEM.
                pl.BlockSpec((dim_in, dim_out), lambda ni, bi: (0, 0)),
                # packed per-batch [gate; eff_bias] rows.
                pl.BlockSpec((None, 2, dim_out), lambda ni, bi: (bi, 0, 0)),
            ],
            out_specs=pl.BlockSpec((None, tile_n, dim_out),
                                   lambda ni, bi: (bi, ni, 0)),
        ),
        compiler_params=pltpu.CompilerParams(
            dimension_semantics=("parallel", "parallel"),
            vmem_limit_bytes=48 * 1024 * 1024,   # past v5e's 16 MiB default scoped limit
        ),
    )(x, w, gb)

    return out


def init_params(key, dim_in, dim_out, dim_c):
    """Deterministic init mimicking nn.Linear default (uniform +-1/sqrt(fan_in))."""
    k1, k2, k3, k4, k5 = jax.random.split(key, 5)
    c1 = 1 + dim_c

    def unif(k, shape, fan_in):
        bound = 1.0 / jnp.sqrt(fan_in)
        return jax.random.uniform(k, shape, jnp.float32, -bound, bound)

    w = unif(k1, (dim_in, dim_out), dim_in)          # _layer.weight^T
    b = unif(k2, (1, dim_out), dim_in)               # _layer.bias
    wg = unif(k3, (c1, dim_out), c1)                 # _hyper_gate.weight^T
    bg = unif(k4, (1, dim_out), c1)                  # _hyper_gate.bias
    wb = unif(k5, (c1, dim_out), c1)                 # _hyper_bias.weight^T (no bias)
    return w, b, wg, bg, wb


def reference(context, x, params):
    w, b, wg, bg, wb = params
    gate = jax.nn.sigmoid(context @ wg + bg)                       # (B, dout)
    bias = context @ wb                                            # (B, dout)
    h = jnp.matmul(x, w, precision=jax.lax.Precision.HIGHEST) + b  # (B, N, dout)
    return h * gate[:, None, :] + bias[:, None, :]


if __name__ == "__main__":
    # Small shapes consistent with the module's forward (x.dim() == 3 path).
    B, N = 2, 64
    dim_in, dim_out, dim_c, dim_hot = 32, 32, 3, 0   # dim_hot unused by forward

    key = jax.random.PRNGKey(0)
    kp, kc, kx = jax.random.split(key, 3)

    params = init_params(kp, dim_in, dim_out, dim_c)
    context = jax.random.normal(kc, (B, 1 + dim_c), jnp.float32)
    x = jax.random.normal(kx, (B, N, dim_in), jnp.float32)

    ref = reference(context, x, params)

    # ---- f32 path: bit-accurate vs the f32 reference -------------------------
    out = concat_squash_linear(context, x, params)
    out = jax.block_until_ready(out)
    assert out.shape == (B, N, dim_out)
    assert jnp.allclose(out, ref, atol=1e-5, rtol=1e-5), "f32 mismatch vs reference"

    # ---- bf16 input path (f32 accumulation): lower HBM bytes, looser tol -----
    out_bf16 = concat_squash_linear(context, x, params,
                                    compute_dtype=jnp.bfloat16)
    out_bf16 = jax.block_until_ready(out_bf16)
    assert jnp.allclose(out_bf16.astype(jnp.float32), ref, atol=5e-2, rtol=5e-2), \
        "bf16 path mismatch vs reference"

    print("KERNEL_OK")
</pallas_src>

<mosaic_0001>
module attributes {stable_mosaic.version = 11 : i64} {
  func.func @_csl_kernel(%arg0: i32, %arg1: i32, %arg2: memref<1x64x32xf32, #tpu.memory_space<vmem>>, %arg3: memref<32x32xf32, #tpu.memory_space<vmem>>, %arg4: memref<1x2x32xf32, #tpu.memory_space<vmem>>, %arg5: memref<1x64x32xf32, #tpu.memory_space<vmem>>) attributes {dimension_semantics = [#tpu.dimension_semantics<parallel>, #tpu.dimension_semantics<parallel>], iteration_bounds = array<i64: 1, 2>, scalar_prefetch = 0 : i64, scratch_operands = 0 : i64, tpu.core_type = #tpu.core_type<tc>, window_params = [{transform_indices = @transform_0, window_bounds = array<i64: 1, 64, 32>}, {pipeline_mode = #tpu.pipeline_mode<synchronous>, transform_indices = @transform_1, window_bounds = array<i64: 32, 32>}, {transform_indices = @transform_2, window_bounds = array<i64: 1, 2, 32>}, {transform_indices = @transform_3, window_bounds = array<i64: 1, 64, 32>}]} {
    %c0 = arith.constant 0 : index
    %c0_0 = arith.constant 0 : index
    %c0_1 = arith.constant 0 : index
    %0 = vector.load %arg2[%c0, %c0_0, %c0_1] : memref<1x64x32xf32, #tpu.memory_space<vmem>>, vector<1x64x32xf32>
    %1 = vector.shape_cast %0 : vector<1x64x32xf32> to vector<64x32xf32>
    %c0_2 = arith.constant 0 : index
    %c0_3 = arith.constant 0 : index
    %2 = vector.load %arg3[%c0_2, %c0_3] : memref<32x32xf32, #tpu.memory_space<vmem>>, vector<32x32xf32>
    %cst = arith.constant dense<0.000000e+00> : vector<64x32xf32>
    %3 = tpu.matmul %1, %2, %cst {dimension_numbers = #tpu.dot_dimension_numbers<[1], [0], [0], [1], [0, 0, 1, 1], [], []>} : vector<64x32xf32>, vector<32x32xf32>, vector<64x32xf32> -> vector<64x32xf32>
    %c0_4 = arith.constant 0 : index
    %c0_5 = arith.constant 0 : index
    %c0_6 = arith.constant 0 : index
    %4 = vector.load %arg4[%c0_4, %c0_5, %c0_6] : memref<1x2x32xf32, #tpu.memory_space<vmem>>, vector<1x1x32xf32>
    %5 = vector.shape_cast %4 : vector<1x1x32xf32> to vector<1x32xf32>
    %c0_7 = arith.constant 0 : index
    %c1 = arith.constant 1 : index
    %c0_8 = arith.constant 0 : index
    %6 = vector.load %arg4[%c0_7, %c1, %c0_8] : memref<1x2x32xf32, #tpu.memory_space<vmem>>, vector<1x1x32xf32>
    %7 = vector.shape_cast %6 : vector<1x1x32xf32> to vector<1x32xf32>
    %8 = vector.broadcast %5 : vector<1x32xf32> to vector<64x32xf32>
    %9 = arith.mulf %3, %8 : vector<64x32xf32>
    %10 = vector.broadcast %7 : vector<1x32xf32> to vector<64x32xf32>
    %11 = arith.addf %9, %10 : vector<64x32xf32>
    %c0_9 = arith.constant 0 : index
    %c0_10 = arith.constant 0 : index
    %c0_11 = arith.constant 0 : index
    %12 = vector.load %arg5[%c0_9, %c0_10, %c0_11] : memref<1x64x32xf32, #tpu.memory_space<vmem>>, vector<1x64x32xf32>
    %13 = vector.shape_cast %12 : vector<1x64x32xf32> to vector<64x32xf32>
    %14 = vector.shape_cast %11 : vector<64x32xf32> to vector<1x64x32xf32>
    tpu.vector_store %arg5[%c0_9, %c0_10, %c0_11], %14 {strides = array<i32>} : memref<1x64x32xf32, #tpu.memory_space<vmem>>, vector<1x64x32xf32>,
    return
  }
  func.func @transform_0(%arg0: i32, %arg1: i32) -> (i32, i32, i32) {
    %c0_i32 = arith.constant 0 : i32
    %c0_i32_0 = arith.constant 0 : i32
    return %arg1, %arg0, %c0_i32 : i32, i32, i32
  }
  func.func @transform_1(%arg0: i32, %arg1: i32) -> (i32, i32) {
    %c0_i32 = arith.constant 0 : i32
    %c0_i32_0 = arith.constant 0 : i32
    %c0_i32_1 = arith.constant 0 : i32
    return %c0_i32, %c0_i32_0 : i32, i32
  }
  func.func @transform_2(%arg0: i32, %arg1: i32) -> (i32, i32, i32) {
    %c0_i32 = arith.constant 0 : i32
    %c0_i32_0 = arith.constant 0 : i32
    %c0_i32_1 = arith.constant 0 : i32
    return %arg1, %c0_i32, %c0_i32_0 : i32, i32, i32
  }
  func.func @transform_3(%arg0: i32, %arg1: i32) -> (i32, i32, i32) {
    %c0_i32 = arith.constant 0 : i32
    %c0_i32_0 = arith.constant 0 : i32
    return %arg1, %arg0, %c0_i32 : i32, i32, i32
  }
}

</mosaic_0001>

<llo_original>
// kernel: tpu_custom_call.1
$region0: #{tpu_custom_call.1}
  #allocation0 [shape = 'u32[]', space=smem, size = 0x4, offset = 0x4, fixed_abs, tag = 'smem constant byte address 0x4 - core index']
  #allocation1 [shape = 'u32[72,128]{1,0:T(1,128)}', space=vmem, size = 0x9000, scoped, tag = 'internal scratch']
  %s0 = inlined_call_operand.vmem [shape: f32[2,64,32], index: 0, kind: input, shape index: {}]
  %s1 = inlined_call_operand.vmem [shape: f32[32,32], index: 1, kind: input, shape index: {}]
  %s2 = inlined_call_operand.vmem [shape: f32[2,2,32], index: 2, kind: input, shape index: {}]
  %s3 = inlined_call_operand.vmem [shape: f32[2,64,32], index: 3, kind: output, shape index: {}]
  %s4 = sld [smem:[#allocation0]]
  $region45: #{tpu_custom_call.1} parent=0
    _
  %s6 = ssub.s32 1, %s4
  %s7 = scalar_select 0, %s6, %s4
  loop: start=0, step=1, limit=4
  $region2: #{tpu_custom_call.1} parent=0 // loop_pre_header
    _
  $region3: #{tpu_custom_call.1} parent=0 // loop_header
    %s9 = sphi 0, %s13
    %p10 = scmp.ge.s32.totalorder %s9, 4
    %s16 = sphi 0, %s28
    %s17 = sphi 0, %s24
    %s18 = sphi 0, %s16
    %s19 = sphi 0, %s17
    %s20 = sphi 0, %s18
    %s21 = sphi 0, %s19
    %s33 = sphi 0, %s35
    %s36 = sphi 0, %s33
    %s37 = sphi 0, %s36
    %s53 = sphi 0, %s37
    %s57 = sphi 0, %s57
    %s59 = sphi 0, %s57
    %s60 = sphi 0, %s59
    %s74 = sphi 0, %s60
    %s80 = sphi 0, %s82
    %s83 = sphi 0, %s80
    %s84 = sphi 0, %s83
    %s100 = sphi 0, %s84
    %s108 = sphi 0, %s110
    %s111 = sphi 0, %s108
    %s112 = sphi 0, %s111
    %s128 = sphi 0, %s112
  $region4: #{tpu_custom_call.1} parent=0 // loop_header_branch
    %12 = sbr.rel (%p10) target = $region8
  $region5: #{tpu_custom_call.1} parent=0 // loop_body
    %s14 = ssub.s32 %s9, 1
    %s15 = ssub.s32 %s9, 2
    %s22 = sadd.s32 1, %s17
    %p23 = scmp.ge.s32.totalorder %s22, 2
    %s24 = scalar_select %p23, 0, %s22
    %s25 = sadd.s32 1, %s16
    %s26 = scalar_select %p23, %s25, %s16
    %p27 = scmp.ge.s32.totalorder %s26, 1
    %s28 = scalar_select %p27, 0, %s26
    %s29 = ssub.s32 %s17, %s24
    %s30 = ssub.s32 %s16, %s28
    %s31 = sor.u32 %s29, %s30
    %p32 = scmp.eq.s32.totalorder %s31, 0
    %s34 = sadd.s32 %s33, 1
    %s35 = scalar_select %p32, %s33, %s34
    %p38 = pneg %p32
    %p39 = scmp.eq.s32.totalorder %s9, 1
    %p40 = por %p38, %p39
    %p41 = scmp.ne.s32.totalorder %s33, %s36
    %p42 = scmp.eq.s32.totalorder %s9, 0
    %p43 = por %p41, %p42
    %p44 = scmp.ne.s32.totalorder %s33, %s36
    %p45 = scmp.eq.s32.totalorder %s14, 1
    %p46 = por %p44, %p45
    %p47 = scmp.ne.s32.totalorder %s36, %s37
    %p48 = scmp.eq.s32.totalorder %s14, 0
    %p49 = por %p47, %p48
    %p50 = scmp.ne.s32.totalorder %s36, %s37
    %p51 = scmp.eq.s32.totalorder %s15, 1
    %p52 = por %p50, %p51
    %p54 = scmp.ne.s32.totalorder %s37, %s53
    %p55 = scmp.eq.s32.totalorder %s15, 0
    %p56 = por %p54, %p55
    %s58 = sadd.s32 %s57, 1
    %p61 = scmp.eq.s32.totalorder %s9, 1
    %p62 = scmp.ne.s32.totalorder %s57, %s59
    %p63 = scmp.eq.s32.totalorder %s9, 0
    %p64 = por %p62, %p63
    %p65 = scmp.ne.s32.totalorder %s57, %s59
    %p66 = scmp.eq.s32.totalorder %s14, 1
    %p67 = por %p65, %p66
    %p68 = scmp.ne.s32.totalorder %s59, %s60
    %p69 = scmp.eq.s32.totalorder %s14, 0
    %p70 = por %p68, %p69
    %p71 = scmp.ne.s32.totalorder %s59, %s60
    %p72 = scmp.eq.s32.totalorder %s15, 1
    %p73 = por %p71, %p72
    %p75 = scmp.ne.s32.totalorder %s60, %s74
    %p76 = scmp.eq.s32.totalorder %s15, 0
    %p77 = por %p75, %p76
    %s78 = ssub.s32 %s17, %s24
    %p79 = scmp.eq.s32.totalorder %s78, 0
    %s81 = sadd.s32 %s80, 1
    %s82 = scalar_select %p79, %s80, %s81
    %p85 = pneg %p79
    %p86 = scmp.eq.s32.totalorder %s9, 1
    %p87 = por %p85, %p86
    %p88 = scmp.ne.s32.totalorder %s80, %s83
    %p89 = scmp.eq.s32.totalorder %s9, 0
    %p90 = por %p88, %p89
    %p91 = scmp.ne.s32.totalorder %s80, %s83
    %p92 = scmp.eq.s32.totalorder %s14, 1
    %p93 = por %p91, %p92
    %p94 = scmp.ne.s32.totalorder %s83, %s84
    %p95 = scmp.eq.s32.totalorder %s14, 0
    %p96 = por %p94, %p95
    %p97 = scmp.ne.s32.totalorder %s83, %s84
    %p98 = scmp.eq.s32.totalorder %s15, 1
    %p99 = por %p97, %p98
    %p101 = scmp.ne.s32.totalorder %s84, %s100
    %p102 = scmp.eq.s32.totalorder %s15, 0
    %p103 = por %p101, %p102
    %s104 = ssub.s32 %s17, %s24
    %s105 = ssub.s32 %s16, %s28
    %s106 = sor.u32 %s104, %s105
    %p107 = scmp.eq.s32.totalorder %s106, 0
    %s109 = sadd.s32 %s108, 1
    %s110 = scalar_select %p107, %s108, %s109
    %p113 = pneg %p107
    %p114 = scmp.eq.s32.totalorder %s9, 1
    %p115 = por %p113, %p114
    %p116 = scmp.ne.s32.totalorder %s108, %s111
    %p117 = scmp.eq.s32.totalorder %s9, 0
    %p118 = por %p116, %p117
    %p119 = scmp.ne.s32.totalorder %s108, %s111
    %p120 = scmp.eq.s32.totalorder %s14, 1
    %p121 = por %p119, %p120
    %p122 = scmp.ne.s32.totalorder %s111, %s112
    %p123 = scmp.eq.s32.totalorder %s14, 0
    %p124 = por %p122, %p123
    %p125 = scmp.ne.s32.totalorder %s111, %s112
    %p126 = scmp.eq.s32.totalorder %s15, 1
    %p127 = por %p125, %p126
    %p129 = scmp.ne.s32.totalorder %s112, %s128
    %p130 = scmp.eq.s32.totalorder %s15, 0
    %p131 = por %p129, %p130
    %p132 = scmp.le.s32.totalorder 1, %s9
    %p133 = scmp.lt.s32.totalorder %s9, 3
    %p134 = pnand %p132, %p133
    %p135 = pneg %p134
    // Predicated region
    $region9: #{tpu_custom_call.1} parent=5 // pred_check
      _
    $region10: #{tpu_custom_call.1} parent=5 // pred_check_branch
      %137 = sbr.rel (%p134) target = $region12
    $region11: #{tpu_custom_call.1} parent=5 // pred_region
      %s138 = ssub.s32 %s9, 1
      // Predicated region
      $region13: #{tpu_custom_call.1} parent=11 // pred_check
        %p139 = pneg %p70
      $region14: #{tpu_custom_call.1} parent=11 // pred_check_branch
        %141 = sbr.rel (%p139) target = $region16
      $region15: #{tpu_custom_call.1} parent=11 // pred_region
        _
      $region16: #{tpu_custom_call.1} parent=11 // pred_fallthru
        _
    $region12: #{tpu_custom_call.1} parent=5 // pred_fallthru
      _
    %p142 = scmp.lt.s32.totalorder %s9, 2
    // Predicated region
    $region17: #{tpu_custom_call.1} parent=5 // pred_check
      %p143 = pneg %p142
    $region18: #{tpu_custom_call.1} parent=5 // pred_check_branch
      %145 = sbr.rel (%p143) target = $region20
    $region19: #{tpu_custom_call.1} parent=5 // pred_region
      // Predicated region
      $region21: #{tpu_custom_call.1} parent=19 // pred_check
        %p146 = pneg %p43
      $region22: #{tpu_custom_call.1} parent=19 // pred_check_branch
        %148 = sbr.rel (%p146) target = $region24
      $region23: #{tpu_custom_call.1} parent=19 // pred_region
        %s149 = smul.u32 8, %s16
        %p150 = scmp.lt.s32.totalorder %s17, 1
        %s151 = scalar_select %p150, %s17, 1
        %p152 = scmp.lt.s32.totalorder %s149, 7
        %s153 = scalar_select %p152, %s149, 7
        %s154 = smul.addr %s151, 8
        %s155 = sadd.s32 %s153, %s154
        %s156 = smul.addr %s155, 8
        %s157 = scalar_lea.vmem %s0, %s156
        %s158 = smul.u32 8, %s16
      $region24: #{tpu_custom_call.1} parent=19 // pred_fallthru
        _
      // Predicated region
      $region25: #{tpu_custom_call.1} parent=19 // pred_check
        %p159 = pneg %p90
      $region26: #{tpu_custom_call.1} parent=19 // pred_check_branch
        %161 = sbr.rel (%p159) target = $region28
      $region27: #{tpu_custom_call.1} parent=19 // pred_region
        %p162 = scmp.lt.s32.totalorder %s17, 1
        %s163 = scalar_select %p162, %s17, 1
        %s164 = smul.addr %s163, 2
        %s165 = scalar_lea.vmem %s2, %s164
      $region28: #{tpu_custom_call.1} parent=19 // pred_fallthru
        _
    $region20: #{tpu_custom_call.1} parent=5 // pred_fallthru
      _
    %p166 = scmp.le.s32.totalorder 1, %s9
    %p167 = scmp.lt.s32.totalorder %s9, 3
    %p168 = pnand %p166, %p167
    %p169 = pneg %p168
    // Predicated region
    $region29: #{tpu_custom_call.1} parent=5 // pred_check
      _
    $region30: #{tpu_custom_call.1} parent=5 // pred_check_branch
      %171 = sbr.rel (%p168) target = $region32
    $region31: #{tpu_custom_call.1} parent=5 // pred_region
      %s172 = ssub.s32 %s9, 1
      %s173 = smul.u32 8, %s18
      %p174 = scmp.lt.s32.totalorder %s19, 1
      %s175 = scalar_select %p174, %s19, 1
      %p176 = scmp.lt.s32.totalorder %s173, 7
      %s177 = scalar_select %p176, %s173, 7
      %s178 = smul.addr %s175, 8
      %s179 = sadd.s32 %s177, %s178
      %s180 = smul.addr %s179, 8
      %s181 = scalar_lea.vmem %s0, %s180
      %p182 = pneg %p49
      %p183 = pneg %p46
      %p184 = pneg %p70
      %p185 = pneg %p67
      %p186 = scmp.lt.s32.totalorder %s19, 1
      %s187 = scalar_select %p186, %s19, 1
      %s188 = smul.addr %s187, 2
      %s189 = scalar_lea.vmem %s2, %s188
      %p190 = pneg %p96
      %p191 = pneg %p93
      %p192 = pneg %p124
      %p193 = pneg %p121
      %s194 = smul.u32 8, %s18
      %p195 = scmp.lt.s32.totalorder %s19, 1
      %s196 = scalar_select %p195, %s19, 1
      %p197 = scmp.lt.s32.totalorder %s194, 7
      %s198 = scalar_select %p197, %s194, 7
      %s199 = smul.addr %s196, 8
      %s200 = sadd.s32 %s198, %s199
      %s201 = smul.addr %s200, 8
      %s202 = scalar_lea.vmem %s3, %s201
      %s203 = smul.u32 8, %s18
      %p204 = scmp.lt.s32.totalorder %s19, 1
      %s205 = scalar_select %p204, %s19, 1
      %p206 = scmp.lt.s32.totalorder %s203, 7
      %s207 = scalar_select %p206, %s203, 7
      %s208 = smul.addr %s205, 8
      %s209 = sadd.s32 %s207, %s208
      %s210 = smul.addr %s209, 8
      %s211 = scalar_lea.vmem %s0, %s210
      %s212 = smul.u32 8, %s18
      %p213 = scmp.lt.s32.totalorder %s19, 1
      %s214 = scalar_select %p213, %s19, 1
      %s215 = smul.addr %s214, 2
      %s216 = scalar_lea.vmem %s2, %s215
      %s217 = smul.u32 8, %s18
      %p218 = scmp.lt.s32.totalorder %s19, 1
      %s219 = scalar_select %p218, %s19, 1
      %p220 = scmp.lt.s32.totalorder %s217, 7
      %s221 = scalar_select %p220, %s217, 7
      %s222 = smul.addr %s219, 8
      %s223 = sadd.s32 %s221, %s222
      %s224 = smul.addr %s223, 8
      %s225 = scalar_lea.vmem %s3, %s224
      %s226 = smul.u32 8, %s18
      %v227 = vld [vmem:[%s211] sm:$0xff]
      %v228 = vld [vmem:[%s211 + $0x8] sm:$0xff]
      %v229 = vld [vmem:[%s211 + $0x10] sm:$0xff]
      %v230 = vld [vmem:[%s211 + $0x18] sm:$0xff]
      %v231 = vld [vmem:[%s211 + $0x20] sm:$0xff]
      %v232 = vld [vmem:[%s211 + $0x28] sm:$0xff]
      %v233 = vld [vmem:[%s211 + $0x30] sm:$0xff]
      %v234 = vld [vmem:[%s211 + $0x38] sm:$0xff]
      %v235 = vld [vmem:[%s1] sm:$0xff]
      %v236 = vld [vmem:[%s1 + $0x8] sm:$0xff]
      %v237 = vld [vmem:[%s1 + $0x10] sm:$0xff]
      %v238 = vld [vmem:[%s1 + $0x18] sm:$0xff]
      %vm239 = vcmask 261120
      %v241 = vsel %vm239, %v227, 0
      %v244 = vsel %vm239, %v228, 0
      %v247 = vsel %vm239, %v229, 0
      %v250 = vsel %vm239, %v230, 0
      %v253 = vsel %vm239, %v231, 0
      %v256 = vsel %vm239, %v232, 0
      %v259 = vsel %vm239, %v233, 0
      %v262 = vsel %vm239, %v234, 0
      %264 = vmatpush.msra.mxu0 0.0
      %265 = vmatpush.msra.mxu0 0.0
      %266 = vmatpush.msra.mxu0 0.0
      %267 = vmatpush.msra.mxu0 0.0
      %268 = vmatpush.msra.mxu0 0.0
      %269 = vmatpush.msra.mxu0 0.0
      %270 = vmatpush.msra.mxu0 0.0
      %271 = vmatpush.msra.mxu0 0.0
      %272 = vmatpush.msra.mxu0 0.0
      %273 = vmatpush.msra.mxu0 0.0
      %274 = vmatpush.msra.mxu0 0.0
      %275 = vmatpush.msra.mxu0 0.0
      %276 = vmatpush.msra.mxu0 %v238
      %277 = vmatpush.msra.mxu0 %v237
      %278 = vmatpush.msra.mxu0 %v236
      %279 = vmatpush.msra.mxu0 %v235
      %280 = vmatmul.f32.gmra.mxu0 %v241
      %v281 = vpop.f32.mrf.mxu0
      %v282 = vadd.f32 0.0, %v281
      %283 = vmatmul.f32.gmra.mxu0 %v244
      %v284 = vpop.f32.mrf.mxu0
      %v285 = vadd.f32 0.0, %v284
      %286 = vmatmul.f32.gmra.mxu0 %v247
      %v287 = vpop.f32.mrf.mxu0
      %v288 = vadd.f32 0.0, %v287
      %289 = vmatmul.f32.gmra.mxu0 %v250
      %v290 = vpop.f32.mrf.mxu0
      %v291 = vadd.f32 0.0, %v290
      %292 = vmatmul.f32.gmra.mxu0 %v253
      %v293 = vpop.f32.mrf.mxu0
      %v294 = vadd.f32 0.0, %v293
      %295 = vmatmul.f32.gmra.mxu0 %v256
      %v296 = vpop.f32.mrf.mxu0
      %v297 = vadd.f32 0.0, %v296
      %298 = vmatmul.f32.gmra.mxu0 %v259
      %v299 = vpop.f32.mrf.mxu0
      %v300 = vadd.f32 0.0, %v299
      %301 = vmatmul.f32.gmra.mxu0 %v262
      %v302 = vpop.f32.mrf.mxu0
      %v303 = vadd.f32 0.0, %v302
      %304 = vdwg.mxu0
      %v305 = vld [vmem:[%s216] sm:$0x1]
      %v306 = vld [vmem:[%s216 + $0x1] sm:$0x1]
      %v307 = vperm.slane %v305, 0
      %v308 = vmul.f32 %v282, %v307
      %v309 = vmul.f32 %v285, %v307
      %v310 = vmul.f32 %v288, %v307
      %v311 = vmul.f32 %v291, %v307
      %v312 = vmul.f32 %v294, %v307
      %v313 = vmul.f32 %v297, %v307
      %v314 = vmul.f32 %v300, %v307
      %v315 = vmul.f32 %v303, %v307
      %v316 = vperm.slane %v306, 0
      %v317 = vadd.f32 %v308, %v316
      %v318 = vadd.f32 %v309, %v316
      %v319 = vadd.f32 %v310, %v316
      %v320 = vadd.f32 %v311, %v316
      %v321 = vadd.f32 %v312, %v316
      %v322 = vadd.f32 %v313, %v316
      %v323 = vadd.f32 %v314, %v316
      %v324 = vadd.f32 %v315, %v316
      %325 = vst.msk [vmem:[%s225] sm:$0xff] %vm239, %v317
      %326 = vst.msk [vmem:[%s225 + $0x8] sm:$0xff] %vm239, %v318
      %327 = vst.msk [vmem:[%s225 + $0x10] sm:$0xff] %vm239, %v319
      %328 = vst.msk [vmem:[%s225 + $0x18] sm:$0xff] %vm239, %v320
      %329 = vst.msk [vmem:[%s225 + $0x20] sm:$0xff] %vm239, %v321
      %330 = vst.msk [vmem:[%s225 + $0x28] sm:$0xff] %vm239, %v322
      %331 = vst.msk [vmem:[%s225 + $0x30] sm:$0xff] %vm239, %v323
      %332 = vst.msk [vmem:[%s225 + $0x38] sm:$0xff] %vm239, %v324
      %s333 = smul.u32 8, %s18
      %p334 = scmp.lt.s32.totalorder %s19, 1
      %s335 = scalar_select %p334, %s19, 1
      %p336 = scmp.lt.s32.totalorder %s333, 7
      %s337 = scalar_select %p336, %s333, 7
      %s338 = smul.addr %s335, 8
      %s339 = sadd.s32 %s337, %s338
      %s340 = smul.addr %s339, 8
      %s341 = scalar_lea.vmem %s3, %s340
      // Predicated region
      $region33: #{tpu_custom_call.1} parent=31 // pred_check
        %p342 = pneg %p121
      $region34: #{tpu_custom_call.1} parent=31 // pred_check_branch
        %344 = sbr.rel (%p342) target = $region36
      $region35: #{tpu_custom_call.1} parent=31 // pred_region
        %s345 = smul.u32 8, %s18
      $region36: #{tpu_custom_call.1} parent=31 // pred_fallthru
        _
    $region32: #{tpu_custom_call.1} parent=5 // pred_fallthru
      _
    %p346 = scmp.le.s32.totalorder 2, %s9
    // Predicated region
    $region37: #{tpu_custom_call.1} parent=5 // pred_check
      %p347 = pneg %p346
    $region38: #{tpu_custom_call.1} parent=5 // pred_check_branch
      %349 = sbr.rel (%p347) target = $region40
    $region39: #{tpu_custom_call.1} parent=5 // pred_region
      %s350 = ssub.s32 %s9, 2
      // Predicated region
      $region41: #{tpu_custom_call.1} parent=39 // pred_check
        %p351 = pneg %p127
      $region42: #{tpu_custom_call.1} parent=39 // pred_check_branch
        %353 = sbr.rel (%p351) target = $region44
      $region43: #{tpu_custom_call.1} parent=39 // pred_region
        %s354 = smul.u32 8, %s20
        %p355 = scmp.lt.s32.totalorder %s21, 1
        %s356 = scalar_select %p355, %s21, 1
        %p357 = scmp.lt.s32.totalorder %s354, 7
        %s358 = scalar_select %p357, %s354, 7
        %s359 = smul.addr %s356, 8
        %s360 = sadd.s32 %s358, %s359
        %s361 = smul.addr %s360, 8
        %s362 = scalar_lea.vmem %s3, %s361
      $region44: #{tpu_custom_call.1} parent=39 // pred_fallthru
        _
    $region40: #{tpu_custom_call.1} parent=5 // pred_fallthru
      _
  $region6: #{tpu_custom_call.1} parent=0 // loop_footer
    %s13 = sadd.s32 1, %s9
  $region7: #{tpu_custom_call.1} parent=0 // loop_footer_branch
    %8 = sbr.rel target = $region3
  $region8: #{tpu_custom_call.1} parent=0 // loop_exit
    _

</llo_original>
